<compile_context>
chip_gen: v5e
topology: v5e:2x2
jax: 0.10.0
libtpu: 0.0.40
codegen_flags: <defaults>
</compile_context>

<pallas_src>
import jax
import jax.numpy as jnp
from jax.experimental import pallas as pl
from jax.experimental.pallas import tpu as pltpu


# ---------------------------------------------------------------------------
# Kernel
# ---------------------------------------------------------------------------
def cca_kernel(x_ref, wvt_ref, bv_ref, g_ref, o_ref):
    # x_ref:   (Bt, C, H*W)   input tile (H*W on lanes, C on sublanes)
    # wvt_ref: (C, C)         value_conv weight, transposed -> (C_in, C_out)
    # bv_ref:  (1, C)         value_conv bias, lane-major row
    # g_ref:   (1, 1) SMEM    gamma scalar
    # o_ref:   (Bt, C, H*W)   output tile
    x = x_ref[...]                                                # (Bt, C, HW)

    # AdaptiveMaxPool2d(1): global max over spatial (cross-lane reduce, XLU —
    # free slot; the kernel is memory-bound anyway).
    pooled = jnp.max(x, axis=-1).astype(jnp.float32)              # (Bt, C)

    # value_conv (1x1 conv on a 1x1 map) + ReLU as a single MXU matmul.
    v = jnp.maximum(
        jnp.dot(pooled, wvt_ref[...], preferred_element_type=jnp.float32)
        + bv_ref[...],
        0.0,
    )                                                             # (Bt, C)

    # gamma * (out_H + out_W) + x  with  out_H + out_W == v  (softmax collapses)
    add = (g_ref[0, 0] * v).astype(x.dtype)                       # (Bt, C)
    o_ref[...] = x + add[:, :, None]                              # broadcast on lanes


# ---------------------------------------------------------------------------
# Wrapper
# ---------------------------------------------------------------------------
def _pick_batch_tile(B, C, HW, itemsize, target_bytes=2 << 20):
    """Largest divisor of B whose (Bt, C, HW) tile is <= ~2 MiB.

    2 MiB per tile => <= ~8 MiB of double-buffered in+out VMEM, safely under
    the default scoped-VMEM limit on v5e/v6e (and v7x's smaller 64 MiB VMEM).
    """
    per_batch = C * HW * itemsize
    bt = max(1, min(B, target_bytes // max(per_batch, 1)))
    while B % bt:
        bt -= 1
    return bt


def criss_cross_attention(x, wq, bq, wk, bk, wv, bv, gamma):
    """x: (B, C, H, W).  wq/wk: (C//16, C), wv: (C, C), biases 1-D, gamma (1,).

    wq/bq/wk/bk are accepted for API parity with the PyTorch module but are
    algebraically inert on the forward output (softmax([e, e]) == [0.5, 0.5]).
    """
    del wq, bq, wk, bk  # no effect on the forward output (see module-level note)

    B, C, H, W = x.shape
    HW = H * W
    Bt = _pick_batch_tile(B, C, HW, jnp.dtype(x.dtype).itemsize)

    x_flat = x.reshape(B, C, HW)                        # lane-dense layout
    wvt = jnp.asarray(wv, jnp.float32).T                # (C_in, C_out)
    bv_row = jnp.asarray(bv, jnp.float32).reshape(1, C)
    gamma_s = jnp.reshape(gamma, (1, 1)).astype(jnp.float32)

    out = pl.pallas_call(
        cca_kernel,
        out_shape=jax.ShapeDtypeStruct((B, C, HW), x.dtype),
        grid=(B // Bt,),
        in_specs=[
            pl.BlockSpec((Bt, C, HW), lambda b: (b, 0, 0)),        # x
            pl.BlockSpec((C, C), lambda b: (0, 0)),                # wv^T
            pl.BlockSpec((1, C), lambda b: (0, 0)),                # bv row
            pl.BlockSpec((1, 1), lambda b: (0, 0),
                         memory_space=pltpu.MemorySpace.SMEM),     # gamma
        ],
        out_specs=pl.BlockSpec((Bt, C, HW), lambda b: (b, 0, 0)),
        compiler_params=pltpu.CompilerParams(
            dimension_semantics=("parallel",),
            vmem_limit_bytes=32 << 20,
        ),
    )(x_flat, wvt, bv_row, gamma_s)

    return out.reshape(B, C, H, W)


# ---------------------------------------------------------------------------
# Pure-JAX reference mirroring the PyTorch forward exactly (full q/k/softmax
# path — it collapses to the same result, so this validates the shortcut).
# ---------------------------------------------------------------------------
def criss_cross_reference(x, wq, bq, wk, bk, wv, bv, gamma):
    pooled = jnp.max(x, axis=(2, 3))                              # (B, C)
    q = jax.nn.relu(pooled @ wq.T + bq)                           # (B, Cq)
    k = jax.nn.relu(pooled @ wk.T + bk)                           # (B, Cq)
    v = jax.nn.relu(pooled @ wv.T + bv)                           # (B, C)
    e = jnp.sum(q * k, axis=1, keepdims=True)                     # (B, 1)  == energy_H == energy_W
    att = jax.nn.softmax(jnp.concatenate([e, e], axis=1), axis=1) # (B, 2)
    att_h, att_w = att[:, 0:1], att[:, 1:2]
    out = v * (att_h + att_w)                                     # (B, C)
    return gamma.reshape(()) * out[:, :, None, None] + x


if __name__ == "__main__":
    B, C, H, W = 2, 32, 16, 16          # in_dim=32 so in_dim // 16 = 2
    Cq = C // 16

    key = jax.random.PRNGKey(0)
    ks = jax.random.split(key, 7)
    x  = jax.random.normal(ks[0], (B, C, H, W), jnp.float32)
    wq = jax.random.normal(ks[1], (Cq, C), jnp.float32) * 0.1
    bq = jax.random.normal(ks[2], (Cq,),   jnp.float32) * 0.1
    wk = jax.random.normal(ks[3], (Cq, C), jnp.float32) * 0.1
    bk = jax.random.normal(ks[4], (Cq,),   jnp.float32) * 0.1
    wv = jax.random.normal(ks[5], (C, C),  jnp.float32) * 0.1
    bv = jax.random.normal(ks[6], (C,),    jnp.float32) * 0.1

    # gamma = 0 (module init, nn.Parameter(torch.zeros(1))): output must equal x.
    gamma0 = jnp.zeros((1,), jnp.float32)
    out0 = criss_cross_attention(x, wq, bq, wk, bk, wv, bv, gamma0)
    jax.block_until_ready(out0)
    ref0 = criss_cross_reference(x, wq, bq, wk, bk, wv, bv, gamma0)
    assert jnp.allclose(out0, ref0, atol=1e-5, rtol=1e-5)

    # Nonzero gamma so the value-projection path is exercised.
    gamma_nz = jnp.full((1,), 0.5, jnp.float32)
    out_nz = criss_cross_attention(x, wq, bq, wk, bk, wv, bv, gamma_nz)
    jax.block_until_ready(out_nz)
    ref_nz = criss_cross_reference(x, wq, bq, wk, bk, wv, bv, gamma_nz)
    assert jnp.allclose(out_nz, ref_nz, atol=1e-5, rtol=1e-5)

    print("KERNEL_OK")
</pallas_src>

<mosaic_0001>
module attributes {stable_mosaic.version = 11 : i64} {
  func.func @cca_kernel(%arg0: i32, %arg1: memref<2x32x256xf32, #tpu.memory_space<vmem>>, %arg2: memref<32x32xf32, #tpu.memory_space<vmem>>, %arg3: memref<1x32xf32, #tpu.memory_space<vmem>>, %arg4: memref<1x1xf32, #tpu.memory_space<smem>>, %arg5: memref<2x32x256xf32, #tpu.memory_space<vmem>>) attributes {dimension_semantics = [#tpu.dimension_semantics<parallel>], iteration_bounds = array<i64: 1>, scalar_prefetch = 0 : i64, scratch_operands = 0 : i64, tpu.core_type = #tpu.core_type<tc>, window_params = [{transform_indices = @transform_0, window_bounds = array<i64: 2, 32, 256>}, {pipeline_mode = #tpu.pipeline_mode<synchronous>, transform_indices = @transform_1, window_bounds = array<i64: 32, 32>}, {pipeline_mode = #tpu.pipeline_mode<synchronous>, transform_indices = @transform_2, window_bounds = array<i64: 1, 32>}, {transform_indices = @transform_3, window_bounds = array<i64: 1, 1>}, {transform_indices = @transform_4, window_bounds = array<i64: 2, 32, 256>}]} {
    %c0 = arith.constant 0 : index
    %c0_0 = arith.constant 0 : index
    %c0_1 = arith.constant 0 : index
    %0 = vector.load %arg1[%c0, %c0_0, %c0_1] : memref<2x32x256xf32, #tpu.memory_space<vmem>>, vector<2x32x256xf32>
    %cst = arith.constant dense<0xFF800000> : vector<2x32xf32>
    %1 = vector.multi_reduction <maximumf>, %0, %cst [2] : vector<2x32x256xf32> to vector<2x32xf32>
    %c0_2 = arith.constant 0 : index
    %c0_3 = arith.constant 0 : index
    %2 = vector.load %arg2[%c0_2, %c0_3] : memref<32x32xf32, #tpu.memory_space<vmem>>, vector<32x32xf32>
    %cst_4 = arith.constant dense<0.000000e+00> : vector<2x32xf32>
    %3 = tpu.matmul %1, %2, %cst_4 {dimension_numbers = #tpu.dot_dimension_numbers<[1], [0], [0], [1], [0, 0, 1, 1], [], []>} : vector<2x32xf32>, vector<32x32xf32>, vector<2x32xf32> -> vector<2x32xf32>
    %c0_5 = arith.constant 0 : index
    %c0_6 = arith.constant 0 : index
    %4 = vector.load %arg3[%c0_5, %c0_6] : memref<1x32xf32, #tpu.memory_space<vmem>>, vector<1x32xf32>
    %5 = vector.broadcast %4 : vector<1x32xf32> to vector<2x32xf32>
    %6 = arith.addf %3, %5 : vector<2x32xf32>
    %cst_7 = arith.constant 0.000000e+00 : f32
    %7 = vector.broadcast %cst_7 : f32 to vector<2x32xf32>
    %8 = arith.maximumf %6, %7 : vector<2x32xf32>
    %c0_8 = arith.constant 0 : index
    %c0_9 = arith.constant 0 : index
    %9 = memref.load %arg4[%c0_8, %c0_9] : memref<1x1xf32, #tpu.memory_space<smem>>
    %10 = vector.broadcast %9 : f32 to vector<2x32xf32>
    %11 = arith.mulf %10, %8 : vector<2x32xf32>
    %12 = vector.shape_cast %11 : vector<2x32xf32> to vector<2x32x1xf32>
    %13 = vector.broadcast %12 : vector<2x32x1xf32> to vector<2x32x256xf32>
    %14 = arith.addf %0, %13 : vector<2x32x256xf32>
    %c0_10 = arith.constant 0 : index
    %c0_11 = arith.constant 0 : index
    %c0_12 = arith.constant 0 : index
    %15 = vector.load %arg5[%c0_10, %c0_11, %c0_12] : memref<2x32x256xf32, #tpu.memory_space<vmem>>, vector<2x32x256xf32>
    tpu.vector_store %arg5[%c0_10, %c0_11, %c0_12], %14 {strides = array<i32>} : memref<2x32x256xf32, #tpu.memory_space<vmem>>, vector<2x32x256xf32>,
    return
  }
  func.func @transform_0(%arg0: i32) -> (i32, i32, i32) {
    %c0_i32 = arith.constant 0 : i32
    %c0_i32_0 = arith.constant 0 : i32
    %c0_i32_1 = arith.constant 0 : i32
    return %arg0, %c0_i32, %c0_i32_0 : i32, i32, i32
  }
  func.func @transform_1(%arg0: i32) -> (i32, i32) {
    %c0_i32 = arith.constant 0 : i32
    %c0_i32_0 = arith.constant 0 : i32
    %c0_i32_1 = arith.constant 0 : i32
    return %c0_i32, %c0_i32_0 : i32, i32
  }
  func.func @transform_2(%arg0: i32) -> (i32, i32) {
    %c0_i32 = arith.constant 0 : i32
    %c0_i32_0 = arith.constant 0 : i32
    %c0_i32_1 = arith.constant 0 : i32
    return %c0_i32, %c0_i32_0 : i32, i32
  }
  func.func @transform_3(%arg0: i32) -> (i32, i32) {
    %c0_i32 = arith.constant 0 : i32
    %c0_i32_0 = arith.constant 0 : i32
    %c0_i32_1 = arith.constant 0 : i32
    return %c0_i32, %c0_i32_0 : i32, i32
  }
  func.func @transform_4(%arg0: i32) -> (i32, i32, i32) {
    %c0_i32 = arith.constant 0 : i32
    %c0_i32_0 = arith.constant 0 : i32
    %c0_i32_1 = arith.constant 0 : i32
    return %arg0, %c0_i32, %c0_i32_0 : i32, i32, i32
  }
}

</mosaic_0001>

<llo_original>
// kernel: tpu_custom_call.1
$region0: #{tpu_custom_call.1}
  #allocation0 [shape = 'u32[]', space=smem, size = 0x4, offset = 0x4, fixed_abs, tag = 'smem constant byte address 0x4 - core index']
  #allocation1 [shape = 'u32[72,128]{1,0:T(1,128)}', space=vmem, size = 0x9000, scoped, tag = 'internal scratch']
  #allocation2 [shape = 'f32[1,1]{1,0:T(1,128)S(6)}', space=smem, size = 0x200, scoped, tag = 'scoped memory for tpu_custom_call.1']
  %s0 = inlined_call_operand.hbm [shape: f32[2,32,256], index: 0, kind: input, shape index: {}]
  %s1 = inlined_call_operand.hbm [shape: f32[32,32], index: 1, kind: input, shape index: {}]
  %s2 = inlined_call_operand.vmem [shape: f32[1,32], index: 2, kind: input, shape index: {}]
  %s3 = inlined_call_operand.<no memory space> [shape: f32[1,1], index: 3, kind: input, shape index: {}]
  %s4 = inlined_call_operand.hbm [shape: f32[2,32,256], index: 4, kind: output, shape index: {}]
  %s5 = sld [smem:[#allocation0]]
  $region34: #{tpu_custom_call.1} parent=0
    _
  %s7 = ssub.s32 1, %s5
  %s8 = scalar_select 0, %s7, %s5
  %9 = sst [smem:[#allocation2]] %s3
  $region1: #{tpu_custom_call.1} parent=0
    #allocation3 [shape = 'u8[65536]{0}', space=vmem, size = 0x10000, scoped, tag = 'input window, operand 0, single buffered']
    #allocation4 [shape = 's32[1]{0}', space=sflag, size = 0x4, scoped, tag = 'scoped memory for tpu_custom_call.1']
    #allocation5 [shape = 's32[1]{0}', space=sflag, size = 0x4, scoped, tag = 'scoped memory for tpu_custom_call.1']
    #allocation6 [shape = 'u8[16384]{0}', space=vmem, size = 0x4000, scoped, tag = 'input window, operand 1, single buffered']
    #allocation7 [shape = 's32[1]{0}', space=sflag, size = 0x4, scoped, tag = 'scoped memory for tpu_custom_call.1']
    #allocation8 [shape = 'u8[65536]{0}', space=vmem, size = 0x10000, scoped, tag = 'output window, operand 0, single buffered']
    %10 = vsyncpa [#allocation4], 0
    %11 = vsyncpa [#allocation7], 0
    %12 = vsyncpa [#allocation5], 0
    // Predicated region
    $region2: #{tpu_custom_call.1} parent=1 // pred_check
      _
    $region3: #{tpu_custom_call.1} parent=1 // pred_check_branch
      %14 = sbr.rel (0) target = $region5
    $region4: #{tpu_custom_call.1} parent=1 // pred_region
      %16 = vsyncadd [#allocation4], 0
      %s17 = sshll.u32 %s0, 4
      %s18 = int_to_ptr.hbm [resolvable:$true] %s17
      %s19 = sshll.u32 [#allocation3], 4
      %s20 = int_to_ptr.vmem [resolvable:$true] %s19
      %25 = dma.hbm_to_vmem [thread:$0]  %s18, 2048, %s20, [#allocation4], 256, 256, 16
    $region5: #{tpu_custom_call.1} parent=1 // pred_fallthru
      _
    // Predicated region
    $region6: #{tpu_custom_call.1} parent=1 // pred_check
      _
    $region7: #{tpu_custom_call.1} parent=1 // pred_check_branch
      %27 = sbr.rel (0) target = $region9
    $region8: #{tpu_custom_call.1} parent=1 // pred_region
      %29 = vsyncadd [#allocation7], 0
      %s30 = sshll.u32 %s1, 4
      %s31 = int_to_ptr.hbm [resolvable:$true] %s30
      %s32 = sshll.u32 [#allocation6], 4
      %s33 = int_to_ptr.vmem [resolvable:$true] %s32
      %38 = dma.hbm_to_vmem [thread:$0]  %s31, 512, %s33, [#allocation7], 128, 128, 8
    $region9: #{tpu_custom_call.1} parent=1 // pred_fallthru
      _
    // Predicated region
    $region10: #{tpu_custom_call.1} parent=1 // pred_check
      _
    $region11: #{tpu_custom_call.1} parent=1 // pred_check_branch
      %40 = sbr.rel (0) target = $region13
    $region12: #{tpu_custom_call.1} parent=1 // pred_region
      _
    $region13: #{tpu_custom_call.1} parent=1 // pred_fallthru
      _
    // Predicated region
    $region14: #{tpu_custom_call.1} parent=1 // pred_check
      _
    $region15: #{tpu_custom_call.1} parent=1 // pred_check_branch
      %42 = sbr.rel (0) target = $region17
    $region16: #{tpu_custom_call.1} parent=1 // pred_region
      _
    $region17: #{tpu_custom_call.1} parent=1 // pred_fallthru
      _
    // Predicated region
    $region18: #{tpu_custom_call.1} parent=1 // pred_check
      _
    $region19: #{tpu_custom_call.1} parent=1 // pred_check_branch
      %44 = sbr.rel (0) target = $region21
    $region20: #{tpu_custom_call.1} parent=1 // pred_region
      %46 = dma.done [#allocation4], 2048
    $region21: #{tpu_custom_call.1} parent=1 // pred_fallthru
      _
    // Predicated region
    $region22: #{tpu_custom_call.1} parent=1 // pred_check
      _
    $region23: #{tpu_custom_call.1} parent=1 // pred_check_branch
      %48 = sbr.rel (0) target = $region25
    $region24: #{tpu_custom_call.1} parent=1 // pred_region
      %50 = dma.done [#allocation7], 512
    $region25: #{tpu_custom_call.1} parent=1 // pred_fallthru
      _
    %v51 = vld [vmem:[#allocation3] sm:$0xff]
    %v52 = vld [vmem:[#allocation3 + $0x8] sm:$0xff]
    %v53 = vld [vmem:[#allocation3 + $0x10] sm:$0xff]
    %v54 = vld [vmem:[#allocation3 + $0x18] sm:$0xff]
    %v55 = vld [vmem:[#allocation3 + $0x20] sm:$0xff]
    %v56 = vld [vmem:[#allocation3 + $0x28] sm:$0xff]
    %v57 = vld [vmem:[#allocation3 + $0x30] sm:$0xff]
    %v58 = vld [vmem:[#allocation3 + $0x38] sm:$0xff]
    %v59 = vld [vmem:[#allocation3 + $0x40] sm:$0xff]
    %v60 = vld [vmem:[#allocation3 + $0x48] sm:$0xff]
    %v61 = vld [vmem:[#allocation3 + $0x50] sm:$0xff]
    %v62 = vld [vmem:[#allocation3 + $0x58] sm:$0xff]
    %v63 = vld [vmem:[#allocation3 + $0x60] sm:$0xff]
    %v64 = vld [vmem:[#allocation3 + $0x68] sm:$0xff]
    %v65 = vld [vmem:[#allocation3 + $0x70] sm:$0xff]
    %v66 = vld [vmem:[#allocation3 + $0x78] sm:$0xff]
    %v67 = vmax.f32 %v51, %v52
    %68 = vmax.xlane.f32.xlu0 %v67
    %v69 = vpop.xlane.xlu0 %68
    %v70 = vmax.f32 %v53, %v54
    %71 = vmax.xlane.f32.xlu0 %v70
    %v72 = vpop.xlane.xlu0 %71
    %v73 = vmax.f32 %v55, %v56
    %74 = vmax.xlane.f32.xlu0 %v73
    %v75 = vpop.xlane.xlu0 %74
    %v76 = vmax.f32 %v57, %v58
    %77 = vmax.xlane.f32.xlu0 %v76
    %v78 = vpop.xlane.xlu0 %77
    %v79 = vmax.f32 %v59, %v60
    %80 = vmax.xlane.f32.xlu0 %v79
    %v81 = vpop.xlane.xlu0 %80
    %v82 = vmax.f32 %v61, %v62
    %83 = vmax.xlane.f32.xlu0 %v82
    %v84 = vpop.xlane.xlu0 %83
    %v85 = vmax.f32 %v63, %v64
    %86 = vmax.xlane.f32.xlu0 %v85
    %v87 = vpop.xlane.xlu0 %86
    %v88 = vmax.f32 %v65, %v66
    %89 = vmax.xlane.f32.xlu0 %v88
    %v90 = vpop.xlane.xlu0 %89
    %v91 = vld [vmem:[#allocation6] sm:$0xff]
    %v92 = vld [vmem:[#allocation6 + $0x8] sm:$0xff]
    %v93 = vld [vmem:[#allocation6 + $0x10] sm:$0xff]
    %v94 = vld [vmem:[#allocation6 + $0x18] sm:$0xff]
    %v95 = vld [vmem:[%s2] sm:$0x1]
    %v97 = vperm.slane %v95, 0
    %v107 = vlaneseq
    %v108 = vand.u32 %v107, 127
    %v109 = vperm.slane %v69, %v108
    %v110 = vadd.s32 %v108, 4294967288
    %v111 = vperm.slane %v72, %v110
    %vm112 = vcmask 130112
    %v113 = vsel %vm112, %v111, %v109
    %v114 = vadd.s32 %v108, 4294967280
    %v115 = vperm.slane %v75, %v114
    %vm116 = vcmask 195712
    %v117 = vsel %vm116, %v115, %v113
    %v118 = vadd.s32 %v108, 4294967272
    %v119 = vperm.slane %v78, %v118
    %vm120 = vcmask 261312
    %v121 = vsel %vm120, %v119, %v117
    %v122 = vperm.slane %v81, %v108
    %v123 = vperm.slane %v84, %v110
    %v124 = vsel %vm112, %v123, %v122
    %v125 = vperm.slane %v87, %v114
    %v126 = vsel %vm116, %v125, %v124
    %v127 = vperm.slane %v90, %v118
    %v128 = vsel %vm120, %v127, %v126
    %vm129 = vcmask 1041409
    %v130 = vsel %vm129, %v128, %v121
    %vm131 = vcmask 261120
    %v132 = vsel %vm131, %v130, 0
    %134 = vmatpush.msra.mxu0 0.0
    %135 = vmatpush.msra.mxu0 0.0
    %136 = vmatpush.msra.mxu0 0.0
    %137 = vmatpush.msra.mxu0 0.0
    %138 = vmatpush.msra.mxu0 0.0
    %139 = vmatpush.msra.mxu0 0.0
    %140 = vmatpush.msra.mxu0 0.0
    %141 = vmatpush.msra.mxu0 0.0
    %142 = vmatpush.msra.mxu0 0.0
    %143 = vmatpush.msra.mxu0 0.0
    %144 = vmatpush.msra.mxu0 0.0
    %145 = vmatpush.msra.mxu0 0.0
    %146 = vmatpush.msra.mxu0 %v94
    %147 = vmatpush.msra.mxu0 %v93
    %148 = vmatpush.msra.mxu0 %v92
    %149 = vmatpush.msra.mxu0 %v91
    %150 = vmatmul.f32.gmra.mxu0 %v132
    %v151 = vpop.f32.mrf.mxu0
    %v152 = vadd.f32 %v97, %v151
    %153 = vdwg.mxu0
    %v154 = vmax.f32 %v152, 0.0
    %s155 = sld [smem:[#allocation2]]
    %v156 = vstv %s155
    %v157 = vmul.f32 %v156, %v154
    %v158 = vperm.slane %v157, 0
    %v159 = vlaneseq
    %v160 = vshrl.u32 %v159, 7
    %162 = vset.pattern.permute.xlu0 %v160
    %163 = vperm.xlu0 %162, %v158
    %v164 = vpop.permute.xlu0 %163
    %v165 = vlaneseq
    %v166 = vshrl.u32 %v165, 7
    %v167 = vadd.s32 %v166, 8
    %168 = vset.pattern.permute.xlu0 %v167
    %169 = vperm.xlu0 %168, %v158
    %v170 = vpop.permute.xlu0 %169
    %v171 = vlaneseq
    %v172 = vshrl.u32 %v171, 7
    %v173 = vadd.s32 %v172, 16
    %174 = vset.pattern.permute.xlu0 %v173
    %175 = vperm.xlu0 %174, %v158
    %v176 = vpop.permute.xlu0 %175
    %v177 = vlaneseq
    %v178 = vshrl.u32 %v177, 7
    %v179 = vadd.s32 %v178, 24
    %180 = vset.pattern.permute.xlu0 %v179
    %181 = vperm.xlu0 %180, %v158
    %v182 = vpop.permute.xlu0 %181
    %v183 = vperm.slane %v157, 1
    %v184 = vlaneseq
    %v185 = vshrl.u32 %v184, 7
    %187 = vset.pattern.permute.xlu0 %v185
    %188 = vperm.xlu0 %187, %v183
    %v189 = vpop.permute.xlu0 %188
    %v190 = vlaneseq
    %v191 = vshrl.u32 %v190, 7
    %v192 = vadd.s32 %v191, 8
    %193 = vset.pattern.permute.xlu0 %v192
    %194 = vperm.xlu0 %193, %v183
    %v195 = vpop.permute.xlu0 %194
    %v196 = vlaneseq
    %v197 = vshrl.u32 %v196, 7
    %v198 = vadd.s32 %v197, 16
    %199 = vset.pattern.permute.xlu0 %v198
    %200 = vperm.xlu0 %199, %v183
    %v201 = vpop.permute.xlu0 %200
    %v202 = vlaneseq
    %v203 = vshrl.u32 %v202, 7
    %v204 = vadd.s32 %v203, 24
    %205 = vset.pattern.permute.xlu0 %v204
    %206 = vperm.xlu0 %205, %v183
    %v207 = vpop.permute.xlu0 %206
    %v208 = vadd.f32 %v51, %v164
    %v209 = vadd.f32 %v52, %v164
    %v210 = vadd.f32 %v53, %v170
    %v211 = vadd.f32 %v54, %v170
    %v212 = vadd.f32 %v55, %v176
    %v213 = vadd.f32 %v56, %v176
    %v214 = vadd.f32 %v57, %v182
    %v215 = vadd.f32 %v58, %v182
    %v216 = vadd.f32 %v59, %v189
    %v217 = vadd.f32 %v60, %v189
    %v218 = vadd.f32 %v61, %v195
    %v219 = vadd.f32 %v62, %v195
    %v220 = vadd.f32 %v63, %v201
    %v221 = vadd.f32 %v64, %v201
    %v222 = vadd.f32 %v65, %v207
    %v223 = vadd.f32 %v66, %v207
    %224 = vst [vmem:[#allocation8] sm:$0xff] %v208
    %225 = vst [vmem:[#allocation8 + $0x8] sm:$0xff] %v209
    %226 = vst [vmem:[#allocation8 + $0x10] sm:$0xff] %v210
    %227 = vst [vmem:[#allocation8 + $0x18] sm:$0xff] %v211
    %228 = vst [vmem:[#allocation8 + $0x20] sm:$0xff] %v212
    %229 = vst [vmem:[#allocation8 + $0x28] sm:$0xff] %v213
    %230 = vst [vmem:[#allocation8 + $0x30] sm:$0xff] %v214
    %231 = vst [vmem:[#allocation8 + $0x38] sm:$0xff] %v215
    %232 = vst [vmem:[#allocation8 + $0x40] sm:$0xff] %v216
    %233 = vst [vmem:[#allocation8 + $0x48] sm:$0xff] %v217
    %234 = vst [vmem:[#allocation8 + $0x50] sm:$0xff] %v218
    %235 = vst [vmem:[#allocation8 + $0x58] sm:$0xff] %v219
    %236 = vst [vmem:[#allocation8 + $0x60] sm:$0xff] %v220
    %237 = vst [vmem:[#allocation8 + $0x68] sm:$0xff] %v221
    %238 = vst [vmem:[#allocation8 + $0x70] sm:$0xff] %v222
    %239 = vst [vmem:[#allocation8 + $0x78] sm:$0xff] %v223
    // Predicated region
    $region26: #{tpu_custom_call.1} parent=1 // pred_check
      _
    $region27: #{tpu_custom_call.1} parent=1 // pred_check_branch
      %241 = sbr.rel (0) target = $region29
    $region28: #{tpu_custom_call.1} parent=1 // pred_region
      %243 = vsyncadd [#allocation5], 0
      %s244 = sshll.u32 [#allocation8], 4
      %s245 = int_to_ptr.vmem [resolvable:$true] %s244
      %s246 = sshll.u32 %s4, 4
      %s247 = int_to_ptr.hbm [resolvable:$true] %s246
      %252 = dma.vmem_to_hbm [thread:$0]  %s245, 2048, %s247, [#allocation5], 256, 256, 16
    $region29: #{tpu_custom_call.1} parent=1 // pred_fallthru
      _
    // Predicated region
    $region30: #{tpu_custom_call.1} parent=1 // pred_check
      _
    $region31: #{tpu_custom_call.1} parent=1 // pred_check_branch
      %254 = sbr.rel (0) target = $region33
    $region32: #{tpu_custom_call.1} parent=1 // pred_region
      %256 = dma.done [#allocation5], 2048
    $region33: #{tpu_custom_call.1} parent=1 // pred_fallthru
      _
    %257 = vsyncpa [#allocation4], 1
    %258 = vsyncpa [#allocation7], 1
    %259 = vsyncpa [#allocation5], 1

</llo_original>
